<compile_context>
chip_gen: v7x
topology: tpu7x:2x2x1
jax: 0.10.0
libtpu: 0.0.40
codegen_flags: <defaults>
</compile_context>

<pallas_src>
import functools

import jax
import jax.numpy as jnp
from jax.experimental import pallas as pl
from jax.experimental.pallas import tpu as pltpu


def pooling_factor(pool_type="avg"):
    return 2 if pool_type == "avgmaxc" else 1


def _round_up(x, m):
    return (x + m - 1) // m * m


_TILE_S_MAX = 2048
_TARGET_BLOCK_BYTES = 6 * 1024 * 1024  # ~6 MiB input blocks (dtype-aware)
_VMEM_BUDGET = 44 * 1024 * 1024        # stay well inside v7x's 64 MiB VMEM


def _pool_small_kernel(x_ref, *out_refs, spatial, pool_type):
    """Regime A: full spatial extent in one block; direct reduce + write."""
    need_sum = pool_type in ("avg", "avgmax", "avgmaxc")
    need_max = pool_type in ("max", "avgmax", "avgmaxc")

    xf = x_ref[...].astype(jnp.float32)
    inv_n = jnp.float32(1.0 / spatial)
    s = (jnp.sum(xf, axis=-1, keepdims=True) * inv_n) if need_sum else None
    m = jnp.max(xf, axis=-1, keepdims=True) if need_max else None

    if pool_type == "avgmaxc":
        avg_ref, max_ref = out_refs
        avg_ref[...] = s.astype(avg_ref.dtype)
        max_ref[...] = m.astype(max_ref.dtype)
    elif pool_type == "max":
        out_refs[0][...] = m.astype(out_refs[0].dtype)
    elif pool_type == "avgmax":
        out_refs[0][...] = (jnp.float32(0.5) * (s + m)).astype(out_refs[0].dtype)
    else:  # 'avg'
        out_refs[0][...] = s.astype(out_refs[0].dtype)


def _pool_tiled_kernel(x_ref, *refs, spatial, tile_s, pool_type):
    """Regime B: tiled spatial reduction with lane-wide f32 accumulators.

    Grid: (row_tiles, spatial_tiles); spatial is the last, "arbitrary" axis.
    """
    need_sum = pool_type in ("avg", "avgmax", "avgmaxc")
    need_max = pool_type in ("max", "avgmax", "avgmaxc")
    n_out = 2 if pool_type == "avgmaxc" else 1

    out_refs = refs[:n_out]
    scratch = list(refs[n_out:])
    sum_acc = scratch.pop(0) if need_sum else None
    max_acc = scratch.pop(0) if need_max else None

    k = pl.program_id(1)
    num_k = pl.cdiv(spatial, tile_s)   # static Python int
    groups = tile_s // 128             # tile_s is a multiple of 128 here

    @pl.when(k == 0)
    def _init():
        if need_sum:
            sum_acc[...] = jnp.zeros_like(sum_acc)
        if need_max:
            max_acc[...] = jnp.full_like(max_acc, -jnp.inf)

    # Cast once to f32: exact accumulation for avg; also avoids the missing
    # bf16 VPU path on v5e.
    xf = x_ref[...].astype(jnp.float32)

    def _accumulate(xs, xm):
        # Fold the tile_s/128 lane groups with elementwise VPU add/max into the
        # lane-wide accumulators; the cross-lane (XLU) reduce is deferred to the
        # finalize step so the hot loop stays vld/HBM-bound.
        if need_sum:
            s = xs[:, 0:128]
            for j in range(1, groups):
                s = s + xs[:, j * 128:(j + 1) * 128]
            sum_acc[...] += s
        if need_max:
            m = xm[:, 0:128]
            for j in range(1, groups):
                m = jnp.maximum(m, xm[:, j * 128:(j + 1) * 128])
            max_acc[...] = jnp.maximum(max_acc[...], m)

    if spatial % tile_s != 0:
        # Only the last spatial tile is ragged: keep every interior step on the
        # unmasked path and generate the mask arithmetic only in the cold branch.
        last = num_k - 1

        @pl.when(k != last)
        def _hot():
            _accumulate(xf, xf)

        @pl.when(k == last)
        def _edge():
            cols = jax.lax.broadcasted_iota(jnp.int32, xf.shape, 1) + last * tile_s
            valid = cols < spatial
            xs = jnp.where(valid, xf, jnp.float32(0.0)) if need_sum else xf
            xm = jnp.where(valid, xf, -jnp.inf) if need_max else xf
            _accumulate(xs, xm)
    else:
        _accumulate(xf, xf)

    @pl.when(k == num_k - 1)
    def _finalize():
        inv_n = jnp.float32(1.0 / spatial)
        s = (jnp.sum(sum_acc[...], axis=-1, keepdims=True) * inv_n) if need_sum else None
        m = jnp.max(max_acc[...], axis=-1, keepdims=True) if need_max else None
        if pool_type == "avgmaxc":
            avg_ref, max_ref = out_refs
            avg_ref[...] = s.astype(avg_ref.dtype)
            max_ref[...] = m.astype(max_ref.dtype)
        elif pool_type == "max":
            out_refs[0][...] = m.astype(out_refs[0].dtype)
        elif pool_type == "avgmax":
            out_refs[0][...] = (jnp.float32(0.5) * (s + m)).astype(out_refs[0].dtype)
        else:  # 'avg'
            out_refs[0][...] = s.astype(out_refs[0].dtype)


@functools.partial(jax.jit, static_argnames=("pool_type",))
def adaptive_avgmax_pool2d(x, pool_type="avg"):
    """JAX/Pallas equivalent of AdaptiveAvgMaxPool2d(output_size=1, pool_type).

    x: (N, C, H, W).  Returns (N, C, 1, 1), or (N, 2*C, 1, 1) for 'avgmaxc'.
    """
    # TODO(synk): only output_size=1 (global pooling) is implemented; the general
    # adaptive-binning case is not needed by this module's defaults.
    if pool_type not in ("avg", "max", "avgmax", "avgmaxc"):
        pool_type = "avg"  # matches the PyTorch module's fallback behavior

    N, C, H, W = x.shape
    rows = N * C
    spatial = H * W
    xr = x.reshape(rows, spatial)

    need_sum = pool_type in ("avg", "avgmax", "avgmaxc")
    need_max = pool_type in ("max", "avgmax", "avgmaxc")
    n_acc = int(need_sum) + int(need_max)
    n_out = 2 if pool_type == "avgmaxc" else 1
    dtype_bytes = jnp.dtype(x.dtype).itemsize

    # --- Spatial tiling -----------------------------------------------------
    single_spatial_block = spatial <= _TILE_S_MAX
    if single_spatial_block:
        tile_s = spatial  # full-extent last block dim: no mask, grid axis collapses
    else:
        tile_s = _TILE_S_MAX
        # Prefer a tile_s (multiple of 128, >= 512) that divides spatial exactly
        # so there is no ragged tile at all (e.g. 224*224 = 50176 -> 1792).
        for d in range(_TILE_S_MAX // 128, 3, -1):
            if spatial % (128 * d) == 0:
                tile_s = 128 * d
                break

    # --- Row tiling: block sized by bytes of the *actual* dtype (~6 MiB) -----
    tile_r = (_TARGET_BLOCK_BYTES // (tile_s * dtype_bytes)) // 8 * 8
    tile_r = max(8, tile_r)
    if tile_r >= rows:
        tile_r = rows  # full-extent rows dim (always legal)

    def _footprint(tr):
        blk = tr * tile_s
        # 2x double-buffered input block + f32 cast temp + lane-wide accumulators.
        return 2 * blk * dtype_bytes + blk * 4 + n_acc * tr * 128 * 4

    while tile_r > 8 and _footprint(tile_r) > _VMEM_BUDGET:
        tile_r = max(8, (tile_r // 2) // 8 * 8)

    # Megacore (v7x has 2 TensorCores): give the "parallel" rows axis >= 2 tiles
    # when there is a non-trivial amount of work, so neither core idles.
    if (pl.cdiv(rows, tile_r) == 1 and rows >= 16
            and rows * spatial * dtype_bytes >= (1 << 20)):
        tile_r = max(8, _round_up((rows + 1) // 2, 8))

    num_row_tiles = pl.cdiv(rows, tile_r)

    out_shape = tuple(jax.ShapeDtypeStruct((rows, 1), x.dtype) for _ in range(n_out))

    vmem_limit = int(min(64 * 1024 * 1024,
                         max(32 * 1024 * 1024,
                             int(1.25 * _footprint(tile_r)) + (2 << 20))))

    cost = pl.CostEstimate(
        flops=n_acc * rows * spatial,
        transcendentals=0,
        bytes_accessed=rows * spatial * dtype_bytes + n_out * rows * dtype_bytes,
    )

    if single_spatial_block:
        kernel = functools.partial(
            _pool_small_kernel, spatial=spatial, pool_type=pool_type)
        grid = (num_row_tiles,)
        in_specs = [pl.BlockSpec((tile_r, spatial), lambda i: (i, 0))]
        out_specs = tuple(pl.BlockSpec((tile_r, 1), lambda i: (i, 0))
                          for _ in range(n_out))
        scratch_shapes = []
        dim_sem = ("parallel",)
    else:
        kernel = functools.partial(
            _pool_tiled_kernel, spatial=spatial, tile_s=tile_s, pool_type=pool_type)
        grid = (num_row_tiles, pl.cdiv(spatial, tile_s))
        in_specs = [pl.BlockSpec((tile_r, tile_s), lambda i, k: (i, k))]
        out_specs = tuple(pl.BlockSpec((tile_r, 1), lambda i, k: (i, 0))
                          for _ in range(n_out))
        # Only allocate the accumulators actually needed by pool_type.
        scratch_shapes = [pltpu.VMEM((tile_r, 128), jnp.float32)
                          for _ in range(n_acc)]
        dim_sem = ("parallel", "arbitrary")

    outs = pl.pallas_call(
        kernel,
        out_shape=out_shape,
        grid_spec=pltpu.PrefetchScalarGridSpec(
            num_scalar_prefetch=0,
            grid=grid,
            in_specs=in_specs,
            out_specs=out_specs,
            scratch_shapes=scratch_shapes,
        ),
        compiler_params=pltpu.CompilerParams(
            dimension_semantics=dim_sem,
            vmem_limit_bytes=vmem_limit,
        ),
        cost_estimate=cost,
    )(xr)

    if pool_type == "avgmaxc":
        avg, mx = outs
        return jnp.concatenate(
            [avg.reshape(N, C, 1, 1), mx.reshape(N, C, 1, 1)], axis=1)
    (out,) = outs
    return out.reshape(N, C, 1, 1)


if __name__ == "__main__":
    key = jax.random.PRNGKey(0)
    x = jax.random.normal(key, (2, 4, 16, 16), dtype=jnp.float32)

    ref_avg = jnp.mean(x, axis=(2, 3), keepdims=True)
    ref_max = jnp.max(x, axis=(2, 3), keepdims=True)

    # Default configuration (pool_type='avg'), as in the module's __init__.
    out = jax.block_until_ready(adaptive_avgmax_pool2d(x, pool_type="avg"))
    assert out.shape == (2, 4, 1, 1)
    assert jnp.allclose(out, ref_avg, atol=1e-5, rtol=1e-5)

    out_am = jax.block_until_ready(adaptive_avgmax_pool2d(x, pool_type="avgmax"))
    assert jnp.allclose(out_am, 0.5 * (ref_avg + ref_max), atol=1e-5, rtol=1e-5)

    out_amc = jax.block_until_ready(adaptive_avgmax_pool2d(x, pool_type="avgmaxc"))
    assert out_amc.shape == (2, 8, 1, 1)
    assert jnp.allclose(out_amc[:, :4], ref_avg, atol=1e-5, rtol=1e-5)
    assert jnp.allclose(out_amc[:, 4:], ref_max, atol=1e-6, rtol=1e-6)

    # Non-128-aligned spatial (7x7 = 49), 'max' path, single-block regime.
    x2 = jax.random.normal(jax.random.PRNGKey(1), (2, 96, 7, 7), dtype=jnp.float32)
    out2 = jax.block_until_ready(adaptive_avgmax_pool2d(x2, pool_type="max"))
    assert jnp.allclose(out2, jnp.max(x2, axis=(2, 3), keepdims=True),
                        atol=1e-6, rtol=1e-6)

    # Large-spatial tiled regime where tile_s divides spatial (no ragged tile).
    x3 = jax.random.normal(jax.random.PRNGKey(2), (1, 8, 48, 48), dtype=jnp.float32)
    out3 = jax.block_until_ready(adaptive_avgmax_pool2d(x3, pool_type="avg"))
    assert jnp.allclose(out3, jnp.mean(x3, axis=(2, 3), keepdims=True),
                        atol=1e-5, rtol=1e-5)

    # Large-spatial tiled regime with a ragged (masked) last tile.
    x4 = jax.random.normal(jax.random.PRNGKey(3), (1, 8, 47, 47), dtype=jnp.float32)
    out4 = jax.block_until_ready(adaptive_avgmax_pool2d(x4, pool_type="avgmax"))
    ref4 = 0.5 * (jnp.mean(x4, axis=(2, 3), keepdims=True)
                  + jnp.max(x4, axis=(2, 3), keepdims=True))
    assert jnp.allclose(out4, ref4, atol=1e-5, rtol=1e-5)

    print("KERNEL_OK")
</pallas_src>

<mosaic_0001>
module attributes {stable_mosaic.version = 11 : i64} {
  func.func @_pool_small_kernel(%arg0: i32, %arg1: memref<8x256xf32, #tpu.memory_space<vmem>>, %arg2: memref<8x1xf32, #tpu.memory_space<vmem>>) attributes {dimension_semantics = [#tpu.dimension_semantics<parallel>], iteration_bounds = array<i64: 1>, scalar_prefetch = 0 : i64, scratch_operands = 0 : i64, tpu.core_type = #tpu.core_type<tc>, window_params = [{transform_indices = @transform_0, window_bounds = array<i64: 8, 256>}, {transform_indices = @transform_1, window_bounds = array<i64: 8, 1>}]} {
    %c0 = arith.constant 0 : index
    %c0_0 = arith.constant 0 : index
    %0 = vector.load %arg1[%c0, %c0_0] : memref<8x256xf32, #tpu.memory_space<vmem>>, vector<8x256xf32>
    %cst = arith.constant dense<0.000000e+00> : vector<8xf32>
    %1 = vector.multi_reduction <add>, %0, %cst [1] : vector<8x256xf32> to vector<8xf32>
    %2 = vector.shape_cast %1 : vector<8xf32> to vector<8x1xf32>
    %cst_1 = arith.constant 3.906250e-03 : f32
    %3 = vector.broadcast %cst_1 : f32 to vector<8x1xf32>
    %4 = arith.mulf %2, %3 : vector<8x1xf32>
    %c0_2 = arith.constant 0 : index
    %c0_3 = arith.constant 0 : index
    %5 = vector.load %arg2[%c0_2, %c0_3] : memref<8x1xf32, #tpu.memory_space<vmem>>, vector<8x1xf32>
    tpu.vector_store %arg2[%c0_2, %c0_3], %4 {strides = array<i32>} : memref<8x1xf32, #tpu.memory_space<vmem>>, vector<8x1xf32>,
    return
  }
  func.func @transform_0(%arg0: i32) -> (i32, i32) {
    %c0_i32 = arith.constant 0 : i32
    %c0_i32_0 = arith.constant 0 : i32
    return %arg0, %c0_i32 : i32, i32
  }
  func.func @transform_1(%arg0: i32) -> (i32, i32) {
    %c0_i32 = arith.constant 0 : i32
    %c0_i32_0 = arith.constant 0 : i32
    return %arg0, %c0_i32 : i32, i32
  }
}

</mosaic_0001>

<llo_original>
// kernel: adaptive_avgmax_pool2d.1
$region0: #{adaptive_avgmax_pool2d.1}
  #allocation0 [shape = 'u32[]', space=smem, size = 0x4, offset = 0x4, fixed_abs, tag = 'smem constant byte address 0x4 - core index']
  #allocation1 [shape = 'u32[144,128]{1,0:T(1,128)}', space=vmem, size = 0x12000, scoped, tag = 'internal scratch']
  %s0 = inlined_call_operand.vmem [shape: f32[8,256], index: 0, kind: input, shape index: {}]
  %s1 = inlined_call_operand.vmem [shape: f32[8,1], index: 1, kind: output, shape index: {}]
  %s2 = sld [smem:[#allocation0]]
  $region14: #{adaptive_avgmax_pool2d.1} parent=0
    _
  %s4 = ssub.s32 1, %s2
  %s5 = scalar_select 0, %s4, %s2
  // Predicated region
  $region2: #{adaptive_avgmax_pool2d.1} parent=0 // pred_check
    _
  $region3: #{adaptive_avgmax_pool2d.1} parent=0 // pred_check_branch
    %7 = sbr.rel (0) target = $region5
  $region4: #{adaptive_avgmax_pool2d.1} parent=0 // pred_region
    _
  $region5: #{adaptive_avgmax_pool2d.1} parent=0 // pred_fallthru
    _
  %v8 = vld [vmem:[%s0] sm:$0xff]
  %v9 = vld [vmem:[%s0 + $0x8] sm:$0xff]
  %v10 = vadd.f32 %v8, %v9
  %11 = vadd.xlane.f32.xlu0 %v10
  %v12 = vpop.xlane.xlu0 %11
  %v13 = vmul.f32 %v12, 0.00390625
  %vm14 = vcmask 7168
  %15 = vst.msk [vmem:[%s1] sm:$0xff] %vm14, %v13
  // Predicated region
  $region6: #{adaptive_avgmax_pool2d.1} parent=0 // pred_check
    _
  $region7: #{adaptive_avgmax_pool2d.1} parent=0 // pred_check_branch
    %17 = sbr.rel (0) target = $region9
  $region8: #{adaptive_avgmax_pool2d.1} parent=0 // pred_region
    _
  $region9: #{adaptive_avgmax_pool2d.1} parent=0 // pred_fallthru
    _
  // Predicated region
  $region10: #{adaptive_avgmax_pool2d.1} parent=0 // pred_check
    _
  $region11: #{adaptive_avgmax_pool2d.1} parent=0 // pred_check_branch
    %19 = sbr.rel (0) target = $region13
  $region12: #{adaptive_avgmax_pool2d.1} parent=0 // pred_region
    _
  $region13: #{adaptive_avgmax_pool2d.1} parent=0 // pred_fallthru
    _

</llo_original>
